<compile_context>
chip_gen: v6e
topology: v6e:2x2x1
jax: 0.10.0
libtpu: 0.0.40
codegen_flags: <defaults>
</compile_context>

<pallas_src>
import math

import jax
import jax.numpy as jnp
from jax.experimental import pallas as pl
from jax.experimental.pallas import tpu as pltpu


def _pe_xyz_kernel(coef_ref, x_ref, o_ref):
    """One (tm, d_model) output tile.

    coef_ref: (4, d_model) VMEM-resident, grid-invariant coefficients
              rows 0..2 = omega pre-masked to the x / y / z column blocks,
              row 3     = phase shift (0 for sin columns, pi/2 for cos columns).
    x_ref:    (tm, 3) xyz positions for this row tile.
    o_ref:    (tm, d_model) output tile.
    """
    w_x = coef_ref[0:1, :]            # (1, d_model)
    w_y = coef_ref[1:2, :]
    w_z = coef_ref[2:3, :]
    shift = coef_ref[3:4, :]

    x0 = x_ref[:, 0:1].astype(jnp.float32)    # (tm, 1)
    x1 = x_ref[:, 1:2].astype(jnp.float32)
    x2 = x_ref[:, 2:3].astype(jnp.float32)

    # phase = pos * omega (+ pi/2 in cos columns); cos(p) == sin(p + pi/2).
    phase = x0 * w_x + x1 * w_y + x2 * w_z + shift
    o_ref[...] = jnp.sin(phase).astype(o_ref.dtype)


def positional_encoding_xyz(x: jax.Array,
                            d_model: int = 64 * 3,
                            tm: int = 8192,
                            out_dtype=jnp.float32) -> jax.Array:
    """Pallas implementation of PositionalEncodingXYZ.forward.

    x: (M, 3) float array of xyz positions.
    returns: (M, d_model) embedding laid out as
             [x_sin | x_cos | y_sin | y_cos | z_sin | z_cos].
    """
    assert d_model % 6 == 0, "d_model must be divisible by 6 (even per-axis dim)"
    M, C = x.shape
    assert C == 3
    half = d_model // 6

    # ---- row-tile selection -------------------------------------------------
    # Clip to the problem size; a tile smaller than M must be a multiple of 8
    # (sublane constraint); a tile equal to M is always legal.
    tm = min(tm, M)
    if tm < M:
        tm = max(8, (tm // 8) * 8)
    # Guarantee >=2 grid steps whenever possible so dimension_semantics
    # ("parallel",) actually shards work across v7x's two TensorCores.
    if M > 8:
        half_rows = max(8, (pl.cdiv(M, 2) // 8) * 8)
        if half_rows < M:
            tm = min(tm, half_rows)
    grid = (pl.cdiv(M, tm),)

    # ---- host-side coefficients (VMEM-resident across the whole grid) -------
    # omega[d] = 1 / 10000 ** (d / half); each coordinate's omega row is zeroed
    # outside its own [sin | cos] column block so the kernel needs no iota /
    # compare / select to pick the coordinate.
    omega = jnp.exp(-(math.log(10000.0) / half)
                    * jnp.arange(half, dtype=jnp.float32))            # (half,)
    per_axis = jnp.concatenate([omega, omega])                        # (2*half,)
    zeros = jnp.zeros((2 * half,), jnp.float32)
    w_x = jnp.concatenate([per_axis, zeros, zeros])                   # (d_model,)
    w_y = jnp.concatenate([zeros, per_axis, zeros])
    w_z = jnp.concatenate([zeros, zeros, per_axis])
    shift = jnp.tile(
        jnp.concatenate([jnp.zeros((half,), jnp.float32),
                         jnp.full((half,), 0.5 * math.pi, jnp.float32)]), 3)
    coef = jnp.stack([w_x, w_y, w_z, shift], axis=0)                  # (4, d_model)

    # ---- VMEM budget (documents the tiling decision; headroom on v7x) -------
    out_lanes = pl.cdiv(d_model, 128) * 128          # 192 -> 256 lane padding
    sub = pl.cdiv(tm, 8) * 8
    out_itemsize = jnp.dtype(out_dtype).itemsize
    need = 2 * sub * (out_lanes * out_itemsize + 128 * 4)  # out + x, double-buffered
    vmem_limit_bytes = int(min(max(need + (4 << 20), 16 << 20), 56 << 20))

    cost = pl.CostEstimate(
        flops=6 * M * d_model,                       # 3 mul + 3 add per element
        transcendentals=M * d_model,                 # one sin per element
        bytes_accessed=M * 3 * 4 + M * d_model * out_itemsize,
    )

    return pl.pallas_call(
        _pe_xyz_kernel,
        out_shape=jax.ShapeDtypeStruct((M, d_model), out_dtype),
        grid_spec=pltpu.PrefetchScalarGridSpec(
            num_scalar_prefetch=0,
            grid=grid,
            in_specs=[
                pl.BlockSpec((4, d_model), lambda i: (0, 0)),   # coef (grid-invariant)
                pl.BlockSpec((tm, 3), lambda i: (i, 0)),        # xyz rows
            ],
            out_specs=pl.BlockSpec((tm, d_model), lambda i: (i, 0)),
        ),
        compiler_params=pltpu.CompilerParams(
            dimension_semantics=("parallel",),
            vmem_limit_bytes=vmem_limit_bytes,
        ),
        cost_estimate=cost,
    )(coef, x)


def _reference(x: jax.Array, d_model: int = 64 * 3) -> jax.Array:
    """Plain-JAX port of the PyTorch forward, for verification."""
    half = d_model // 6
    omega = jnp.arange(half, dtype=jnp.float32) / half
    omega = 1.0 / (10000.0 ** omega)
    outs = []
    for c in range(3):
        phase = jnp.einsum("m,d->md", x[:, c].astype(jnp.float32), omega)
        outs.append(jnp.concatenate([jnp.sin(phase), jnp.cos(phase)], axis=1))
    return jnp.concatenate(outs, axis=1)


if __name__ == "__main__":
    key = jax.random.PRNGKey(0)
    d_model = 64 * 3
    M = 40                       # small, deliberately not a multiple of the tile
    x = jax.random.uniform(key, (M, 3), dtype=jnp.float32, minval=-4.0, maxval=4.0)

    ref = _reference(x, d_model=d_model)

    # Multi-step grid with a padded tail block (forced small tile).
    out = jax.block_until_ready(positional_encoding_xyz(x, d_model=d_model, tm=16))
    assert out.shape == (M, d_model)
    assert jnp.allclose(out, ref, atol=1e-4, rtol=1e-4), "mismatch vs reference (tm=16)"

    # Default path (large tile, auto-clipped + split into >=2 grid steps).
    out2 = jax.block_until_ready(positional_encoding_xyz(x, d_model=d_model))
    assert jnp.allclose(out2, ref, atol=1e-4, rtol=1e-4), "mismatch vs reference (default tm)"

    # Optional bf16 output (halves HBM writeback); looser tolerance.
    out_bf16 = jax.block_until_ready(
        positional_encoding_xyz(x, d_model=d_model, out_dtype=jnp.bfloat16))
    assert out_bf16.dtype == jnp.bfloat16
    assert jnp.allclose(out_bf16.astype(jnp.float32), ref, atol=2e-2, rtol=2e-2), \
        "mismatch vs reference (bf16 output)"

    print("KERNEL_OK")
</pallas_src>

<mosaic_0001>
module attributes {stable_mosaic.version = 11 : i64} {
  func.func @_pe_xyz_kernel(%arg0: i32, %arg1: memref<4x192xf32, #tpu.memory_space<vmem>>, %arg2: memref<16x3xf32, #tpu.memory_space<vmem>>, %arg3: memref<16x192xf32, #tpu.memory_space<vmem>>) attributes {dimension_semantics = [#tpu.dimension_semantics<parallel>], iteration_bounds = array<i64: 3>, scalar_prefetch = 0 : i64, scratch_operands = 0 : i64, tpu.core_type = #tpu.core_type<tc>, window_params = [{pipeline_mode = #tpu.pipeline_mode<synchronous>, transform_indices = @transform_0, window_bounds = array<i64: 4, 192>}, {transform_indices = @transform_1, window_bounds = array<i64: 16, 3>}, {transform_indices = @transform_2, window_bounds = array<i64: 16, 192>}]} {
    %c0 = arith.constant 0 : index
    %c0_0 = arith.constant 0 : index
    %0 = vector.load %arg1[%c0, %c0_0] : memref<4x192xf32, #tpu.memory_space<vmem>>, vector<1x192xf32>
    %c1 = arith.constant 1 : index
    %c0_1 = arith.constant 0 : index
    %1 = vector.load %arg1[%c1, %c0_1] : memref<4x192xf32, #tpu.memory_space<vmem>>, vector<1x192xf32>
    %c2 = arith.constant 2 : index
    %c0_2 = arith.constant 0 : index
    %2 = vector.load %arg1[%c2, %c0_2] : memref<4x192xf32, #tpu.memory_space<vmem>>, vector<1x192xf32>
    %c3 = arith.constant 3 : index
    %c0_3 = arith.constant 0 : index
    %3 = vector.load %arg1[%c3, %c0_3] : memref<4x192xf32, #tpu.memory_space<vmem>>, vector<1x192xf32>
    %c0_4 = arith.constant 0 : index
    %c0_5 = arith.constant 0 : index
    %4 = vector.load %arg2[%c0_4, %c0_5] : memref<16x3xf32, #tpu.memory_space<vmem>>, vector<16x1xf32>
    %c0_6 = arith.constant 0 : index
    %c1_7 = arith.constant 1 : index
    %5 = vector.load %arg2[%c0_6, %c1_7] : memref<16x3xf32, #tpu.memory_space<vmem>>, vector<16x1xf32>
    %c0_8 = arith.constant 0 : index
    %c2_9 = arith.constant 2 : index
    %6 = vector.load %arg2[%c0_8, %c2_9] : memref<16x3xf32, #tpu.memory_space<vmem>>, vector<16x1xf32>
    %7 = vector.broadcast %4 : vector<16x1xf32> to vector<16x192xf32>
    %8 = vector.broadcast %0 : vector<1x192xf32> to vector<16x192xf32>
    %9 = arith.mulf %7, %8 : vector<16x192xf32>
    %10 = vector.broadcast %5 : vector<16x1xf32> to vector<16x192xf32>
    %11 = vector.broadcast %1 : vector<1x192xf32> to vector<16x192xf32>
    %12 = arith.mulf %10, %11 : vector<16x192xf32>
    %13 = arith.addf %9, %12 : vector<16x192xf32>
    %14 = vector.broadcast %6 : vector<16x1xf32> to vector<16x192xf32>
    %15 = vector.broadcast %2 : vector<1x192xf32> to vector<16x192xf32>
    %16 = arith.mulf %14, %15 : vector<16x192xf32>
    %17 = arith.addf %13, %16 : vector<16x192xf32>
    %18 = vector.broadcast %3 : vector<1x192xf32> to vector<16x192xf32>
    %19 = arith.addf %17, %18 : vector<16x192xf32>
    %20 = math.sin %19 : vector<16x192xf32>
    %c0_10 = arith.constant 0 : index
    %c0_11 = arith.constant 0 : index
    %21 = vector.load %arg3[%c0_10, %c0_11] : memref<16x192xf32, #tpu.memory_space<vmem>>, vector<16x192xf32>
    tpu.vector_store %arg3[%c0_10, %c0_11], %20 {strides = array<i32>} : memref<16x192xf32, #tpu.memory_space<vmem>>, vector<16x192xf32>,
    return
  }
  func.func @transform_0(%arg0: i32) -> (i32, i32) {
    %c0_i32 = arith.constant 0 : i32
    %c0_i32_0 = arith.constant 0 : i32
    %c0_i32_1 = arith.constant 0 : i32
    return %c0_i32, %c0_i32_0 : i32, i32
  }
  func.func @transform_1(%arg0: i32) -> (i32, i32) {
    %c0_i32 = arith.constant 0 : i32
    %c0_i32_0 = arith.constant 0 : i32
    return %arg0, %c0_i32 : i32, i32
  }
  func.func @transform_2(%arg0: i32) -> (i32, i32) {
    %c0_i32 = arith.constant 0 : i32
    %c0_i32_0 = arith.constant 0 : i32
    return %arg0, %c0_i32 : i32, i32
  }
}

</mosaic_0001>

<llo_original>
// kernel: tpu_custom_call.1
$region0: #{tpu_custom_call.1}
  #allocation0 [shape = 'u32[]', space=smem, size = 0x4, offset = 0x4, fixed_abs, tag = 'smem constant byte address 0x4 - core index']
  #allocation1 [shape = 'u32[144,128]{1,0:T(1,128)}', space=vmem, size = 0x12000, scoped, tag = 'internal scratch']
  %s0 = inlined_call_operand.vmem [shape: f32[4,192], index: 0, kind: input, shape index: {}]
  %s1 = inlined_call_operand.vmem [shape: f32[40,3], index: 1, kind: input, shape index: {}]
  %s2 = inlined_call_operand.hbm [shape: f32[40,192], index: 2, kind: output, shape index: {}]
  %s3 = sld [smem:[#allocation0]]
  $region41: #{tpu_custom_call.1} parent=0
    _
  %s5 = ssub.s32 1, %s3
  %s6 = scalar_select 0, %s5, %s3
  $region1: #{tpu_custom_call.1} parent=0
    #allocation2 [shape = 'u8[32768]{0}', space=vmem, size = 0x8000, scoped, tag = 'output window, operand 0']
    #allocation3 [shape = 's32[2]{0}', space=sflag, size = 0x8, scoped, tag = 'scoped memory for tpu_custom_call.1']
    %7 = vsyncpa [#allocation3], 0
    %s8 = scalar_lea.sflag [#allocation3], 1
    %9 = vsyncpa %s8, 0
    loop: start=0, step=1, limit=5
    $region2: #{tpu_custom_call.1} parent=1 // loop_pre_header
      _
    $region3: #{tpu_custom_call.1} parent=1 // loop_header
      %s11 = sphi 0, %s15
      %p12 = scmp.ge.s32.totalorder %s11, 5
      %s19 = sphi 0, %s19
      %s21 = sphi 0, %s19
      %s22 = sphi 0, %s21
      %s36 = sphi 0, %s22
      %s42 = sphi 0, %s44
      %s45 = sphi 0, %s42
      %s46 = sphi 0, %s45
      %s62 = sphi 0, %s46
      %s68 = sphi 0, %s70
      %s71 = sphi 0, %s68
      %s72 = sphi 0, %s71
      %s88 = sphi 0, %s72
    $region4: #{tpu_custom_call.1} parent=1 // loop_header_branch
      %14 = sbr.rel (%p12) target = $region8
    $region5: #{tpu_custom_call.1} parent=1 // loop_body
      %s16 = ssub.s32 %s11, 1
      %s17 = ssub.s32 %s11, 2
      %s18 = sadd.s32 %s11, 1
      %s20 = sadd.s32 %s19, 1
      %p23 = scmp.eq.s32.totalorder %s11, 2
      %p24 = scmp.ne.s32.totalorder %s19, %s21
      %p25 = scmp.eq.s32.totalorder %s11, 0
      %p26 = por %p24, %p25
      %p27 = scmp.ne.s32.totalorder %s19, %s21
      %p28 = scmp.eq.s32.totalorder %s16, 2
      %p29 = por %p27, %p28
      %p30 = scmp.ne.s32.totalorder %s21, %s22
      %p31 = scmp.eq.s32.totalorder %s16, 0
      %p32 = por %p30, %p31
      %p33 = scmp.ne.s32.totalorder %s21, %s22
      %p34 = scmp.eq.s32.totalorder %s17, 2
      %p35 = por %p33, %p34
      %p37 = scmp.ne.s32.totalorder %s22, %s36
      %p38 = scmp.eq.s32.totalorder %s17, 0
      %p39 = por %p37, %p38
      %s40 = ssub.s32 %s11, %s18
      %p41 = scmp.eq.s32.totalorder %s40, 0
      %s43 = sadd.s32 %s42, 1
      %s44 = scalar_select %p41, %s42, %s43
      %p47 = pneg %p41
      %p48 = scmp.eq.s32.totalorder %s11, 2
      %p49 = por %p47, %p48
      %p50 = scmp.ne.s32.totalorder %s42, %s45
      %p51 = scmp.eq.s32.totalorder %s11, 0
      %p52 = por %p50, %p51
      %p53 = scmp.ne.s32.totalorder %s42, %s45
      %p54 = scmp.eq.s32.totalorder %s16, 2
      %p55 = por %p53, %p54
      %p56 = scmp.ne.s32.totalorder %s45, %s46
      %p57 = scmp.eq.s32.totalorder %s16, 0
      %p58 = por %p56, %p57
      %p59 = scmp.ne.s32.totalorder %s45, %s46
      %p60 = scmp.eq.s32.totalorder %s17, 2
      %p61 = por %p59, %p60
      %p63 = scmp.ne.s32.totalorder %s46, %s62
      %p64 = scmp.eq.s32.totalorder %s17, 0
      %p65 = por %p63, %p64
      %s66 = ssub.s32 %s11, %s18
      %p67 = scmp.eq.s32.totalorder %s66, 0
      %s69 = sadd.s32 %s68, 1
      %s70 = scalar_select %p67, %s68, %s69
      %p73 = pneg %p67
      %p74 = scmp.eq.s32.totalorder %s11, 2
      %p75 = por %p73, %p74
      %p76 = scmp.ne.s32.totalorder %s68, %s71
      %p77 = scmp.eq.s32.totalorder %s11, 0
      %p78 = por %p76, %p77
      %p79 = scmp.ne.s32.totalorder %s68, %s71
      %p80 = scmp.eq.s32.totalorder %s16, 2
      %p81 = por %p79, %p80
      %p82 = scmp.ne.s32.totalorder %s71, %s72
      %p83 = scmp.eq.s32.totalorder %s16, 0
      %p84 = por %p82, %p83
      %p85 = scmp.ne.s32.totalorder %s71, %s72
      %p86 = scmp.eq.s32.totalorder %s17, 2
      %p87 = por %p85, %p86
      %p89 = scmp.ne.s32.totalorder %s72, %s88
      %p90 = scmp.eq.s32.totalorder %s17, 0
      %p91 = por %p89, %p90
      %p92 = scmp.le.s32.totalorder 1, %s11
      %p93 = scmp.lt.s32.totalorder %s11, 4
      %p94 = pnand %p92, %p93
      %p95 = pneg %p94
      // Predicated region
      $region9: #{tpu_custom_call.1} parent=5 // pred_check
        _
      $region10: #{tpu_custom_call.1} parent=5 // pred_check_branch
        %97 = sbr.rel (%p94) target = $region12
      $region11: #{tpu_custom_call.1} parent=5 // pred_region
        %s98 = ssub.s32 %s11, 1
        // Predicated region
        $region13: #{tpu_custom_call.1} parent=11 // pred_check
          %p99 = pneg %p32
        $region14: #{tpu_custom_call.1} parent=11 // pred_check_branch
          %101 = sbr.rel (%p99) target = $region16
        $region15: #{tpu_custom_call.1} parent=11 // pred_region
          _
        $region16: #{tpu_custom_call.1} parent=11 // pred_fallthru
          _
      $region12: #{tpu_custom_call.1} parent=5 // pred_fallthru
        _
      %p102 = scmp.lt.s32.totalorder %s11, 3
      // Predicated region
      $region17: #{tpu_custom_call.1} parent=5 // pred_check
        %p103 = pneg %p102
      $region18: #{tpu_custom_call.1} parent=5 // pred_check_branch
        %105 = sbr.rel (%p103) target = $region20
      $region19: #{tpu_custom_call.1} parent=5 // pred_region
        // Predicated region
        $region21: #{tpu_custom_call.1} parent=19 // pred_check
          %p106 = pneg %p52
        $region22: #{tpu_custom_call.1} parent=19 // pred_check_branch
          %108 = sbr.rel (%p106) target = $region24
        $region23: #{tpu_custom_call.1} parent=19 // pred_region
          %s109 = smul.u32 2, %s11
          %s110 = ssub.s32 5, %s109
          %p111 = scmp.lt.s32.totalorder %s110, 2
          %s112 = scalar_select %p111, %s110, 2
          %s113 = smul.u32 128, %s112
          %p114 = scmp.lt.s32.totalorder %s109, 4
          %s115 = scalar_select %p114, %s109, 4
          %s116 = smul.addr %s115, 8
          %s117 = scalar_lea.vmem %s1, %s116
          %s118 = smul.u32 2, %s11
          %s119 = ssub.s32 5, %s118
          %p120 = scmp.lt.s32.totalorder %s119, 2
          %s121 = scalar_select %p120, %s119, 2
          %s122 = smul.u32 128, %s121
        $region24: #{tpu_custom_call.1} parent=19 // pred_fallthru
          _
      $region20: #{tpu_custom_call.1} parent=5 // pred_fallthru
        _
      %p123 = scmp.le.s32.totalorder 1, %s11
      %p124 = scmp.lt.s32.totalorder %s11, 4
      %p125 = pnand %p123, %p124
      %p126 = pneg %p125
      // Predicated region
      $region25: #{tpu_custom_call.1} parent=5 // pred_check
        _
      $region26: #{tpu_custom_call.1} parent=5 // pred_check_branch
        %128 = sbr.rel (%p125) target = $region28
      $region27: #{tpu_custom_call.1} parent=5 // pred_region
        %s129 = ssub.s32 %s11, 1
        %p130 = pneg %p32
        %p131 = pneg %p29
        %s132 = smul.u32 2, %s16
        %s133 = ssub.s32 5, %s132
        %p134 = scmp.lt.s32.totalorder %s133, 2
        %s135 = scalar_select %p134, %s133, 2
        %s136 = smul.u32 128, %s135
        %p137 = scmp.lt.s32.totalorder %s132, 4
        %s138 = scalar_select %p137, %s132, 4
        %s139 = smul.addr %s138, 8
        %s140 = scalar_lea.vmem %s1, %s139
        %p141 = pneg %p58
        %p142 = pneg %p55
        %p143 = pneg %p84
        %p144 = pneg %p81
        %s145 = sand.u32 %s71, 1
        %s146 = scalar_lea.sflag [#allocation3], %s145
        %s147 = sand.u32 %s71, 1
        %s148 = smul.addr %s147, 32
        %s149 = scalar_lea.vmem [#allocation2], %s148
        %s150 = smul.u32 2, %s16
        %s151 = ssub.s32 5, %s150
        %p152 = scmp.lt.s32.totalorder %s151, 2
        %s153 = scalar_select %p152, %s151, 2
        %s154 = smul.u32 128, %s153
        %p155 = scmp.lt.s32.totalorder %s150, 4
        %s156 = scalar_select %p155, %s150, 4
        %s157 = smul.addr %s156, 8
        %s158 = scalar_lea.vmem %s1, %s157
        %s159 = smul.u32 2, %s16
        %s160 = ssub.s32 5, %s159
        %p161 = scmp.lt.s32.totalorder %s160, 2
        %s162 = scalar_select %p161, %s160, 2
        %s163 = smul.u32 128, %s162
        %s164 = smul.u32 2, %s16
        %s165 = ssub.s32 5, %s164
        %p166 = scmp.lt.s32.totalorder %s165, 2
        %s167 = scalar_select %p166, %s165, 2
        %s168 = smul.u32 128, %s167
        %s169 = smul.u32 %s168, 2
        %v170 = vld [vmem:[%s0] ss:$4 sm:$0x3]
        %s171 = scalar_lea.vmem %s0, 1
        %v172 = vld [vmem:[%s171] ss:$4 sm:$0x3]
        %s173 = scalar_lea.vmem %s0, 2
        %v174 = vld [vmem:[%s173] ss:$4 sm:$0x3]
        %s175 = scalar_lea.vmem %s0, 3
        %v176 = vld [vmem:[%s175] ss:$4 sm:$0x3]
        %v177 = vld [vmem:[%s158] sm:$0xff]
        %v178 = vld [vmem:[%s158 + $0x8] sm:$0xff]
        %180 = vset.pattern.permute.xlu0 0
        %181 = vperm.xlu0 %180, %v177
        %v182 = vpop.permute.xlu0 %181
        %185 = vset.pattern.permute.xlu0 0
        %186 = vperm.xlu0 %185, %v178
        %v187 = vpop.permute.xlu0 %186
        %v190 = vlaneseq
        %v191 = vshrl.u32 %v190, 7
        %v192 = vsub.s32 0, %v191
        %v193 = vrot.slane %v170, %v192
        %v194 = vlaneseq
        %v195 = vshrl.u32 %v194, 7
        %v196 = vsub.s32 1, %v195
        %v197 = vrot.slane %v170, %v196
        %v200 = vmul.f32 %v182, %v193
        %v201 = vmul.f32 %v182, %v197
        %v202 = vmul.f32 %v187, %v193
        %v203 = vmul.f32 %v187, %v197
        %204 = vset.pattern.permute.xlu0 1
        %205 = vperm.xlu0 %204, %v177
        %v206 = vpop.permute.xlu0 %205
        %208 = vset.pattern.permute.xlu0 1
        %209 = vperm.xlu0 %208, %v178
        %v210 = vpop.permute.xlu0 %209
        %v213 = vlaneseq
        %v214 = vshrl.u32 %v213, 7
        %v215 = vsub.s32 0, %v214
        %v216 = vrot.slane %v172, %v215
        %v217 = vlaneseq
        %v218 = vshrl.u32 %v217, 7
        %v219 = vsub.s32 1, %v218
        %v220 = vrot.slane %v172, %v219
        %v223 = vmul.f32 %v206, %v216
        %v224 = vmul.f32 %v206, %v220
        %v225 = vmul.f32 %v210, %v216
        %v226 = vmul.f32 %v210, %v220
        %v227 = vadd.f32 %v200, %v223
        %v228 = vadd.f32 %v201, %v224
        %v229 = vadd.f32 %v202, %v225
        %v230 = vadd.f32 %v203, %v226
        %231 = vset.pattern.permute.xlu0 2
        %232 = vperm.xlu0 %231, %v177
        %v233 = vpop.permute.xlu0 %232
        %235 = vset.pattern.permute.xlu0 2
        %236 = vperm.xlu0 %235, %v178
        %v237 = vpop.permute.xlu0 %236
        %v240 = vlaneseq
        %v241 = vshrl.u32 %v240, 7
        %v242 = vsub.s32 0, %v241
        %v243 = vrot.slane %v174, %v242
        %v244 = vlaneseq
        %v245 = vshrl.u32 %v244, 7
        %v246 = vsub.s32 1, %v245
        %v247 = vrot.slane %v174, %v246
        %v250 = vmul.f32 %v233, %v243
        %v251 = vmul.f32 %v233, %v247
        %v252 = vmul.f32 %v237, %v243
        %v253 = vmul.f32 %v237, %v247
        %v254 = vadd.f32 %v227, %v250
        %v255 = vadd.f32 %v228, %v251
        %v256 = vadd.f32 %v229, %v252
        %v257 = vadd.f32 %v230, %v253
        %v259 = vlaneseq
        %v260 = vshrl.u32 %v259, 7
        %v261 = vsub.s32 0, %v260
        %v262 = vrot.slane %v176, %v261
        %v263 = vlaneseq
        %v264 = vshrl.u32 %v263, 7
        %v265 = vsub.s32 1, %v264
        %v266 = vrot.slane %v176, %v265
        %v269 = vadd.f32 %v254, %v262
        %v270 = vadd.f32 %v255, %v266
        %v271 = vadd.f32 %v256, %v262
        %v272 = vadd.f32 %v257, %v266
        %v273 = vand.u32 2147483647, %v269
        %vm274 = vcmp.le.f32.partialorder %v273, 0.7853982
        %vm275 = vcmp.lt.s32.totalorder %v269, 0
        %v276 = vand.u32 %v269, 2139095040
        %v277 = vshrl.u32 %v276, 23
        %v278 = vsub.s32 %v277, 127
        %v279 = vand.u32 2147483647, %v269
        %v280 = vand.u32 %v279, 8388607
        %v281 = vor.u32 %v280, 8388608
        %v282 = vsub.s32 0, %v281
        %v283 = vadd.s32 %v278, 1
        %vm284 = vcmp.gt.s32.totalorder %v283, 0
        %v285 = vsel %vm284, %v283, 0
        %v286 = vshrl.u32 %v285, 5
        %v287 = vand.u32 %v285, 31
        %v288 = vsub.s32 32, %v287
        %v289 = vshrl.u32 683565275, %v288
        %v290 = vshll.u32 683565275, %v287
        %v291 = vshrl.u32 2475754826, %v288
        %v292 = vor.u32 %v290, %v291
        %v293 = vshll.u32 2475754826, %v287
        %v294 = vshrl.u32 2131351028, %v288
        %v295 = vor.u32 %v293, %v294
        %v296 = vshll.u32 2131351028, %v287
        %v297 = vshrl.u32 2102212464, %v288
        %v298 = vor.u32 %v296, %v297
        %v299 = vshll.u32 2102212464, %v287
        %v300 = vshrl.u32 920167782, %v288
        %v301 = vor.u32 %v299, %v300
        %v302 = vshll.u32 920167782, %v287
        %v303 = vshrl.u32 1326507024, %v288
        %v304 = vor.u32 %v302, %v303
        %vm305 = vcmp.lt.s32.totalorder %v286, 1
        %vm306 = vcmp.lt.s32.totalorder %v286, 2
        %vm307 = vcmp.lt.s32.totalorder %v286, 3
        %vm308 = vcmp.lt.s32.totalorder %v286, 4
        %v309 = vsel %vm305, %v289, %v292
        %v310 = vsel %vm308, %v298, 2102212464
        %v311 = vsel %vm307, %v295, %v310
        %v312 = vsel %vm306, %v309, %v311
        %v313 = vsel %vm305, %v292, %v295
        %v314 = vsel %vm308, %v301, 920167782
        %v315 = vsel %vm307, %v298, %v314
        %v316 = vsel %vm306, %v313, %v315
        %v317 = vsel %vm305, %v295, %v298
        %v318 = vsel %vm308, %v304, 1326507024
        %v319 = vsel %vm307, %v301, %v318
        %v320 = vsel %vm306, %v317, %v319
        %v321 = vshll.u32 %v281, 8
        %v322 = vmul.u32.u64.compose %v321, %v320
        %v323 = vextract.low.u32 %v322
        %v324 = vextract.high.u32 %v322
        %v325 = vmul.u32.u64.compose %v321, %v316
        %v326 = vextract.low.u32 %v325
        %v327 = vextract.high.u32 %v325
        %v328 = vmul.u32 %v321, %v312
        %v329 = vadd.s32 %v324, %v326
        %vm330 = vc.u32 %v324, %v326
        %v331 = vadd.s32 %v327, 1
        %v332 = vsel %vm330, %v331, %v327
        %v333 = vadd.s32 %v328, %v332
        %v334 = vadd.s32 %v333, 536870912
        %v335 = vshrl.u32 %v334, 30
        %v336 = vshll.u32 %v335, 30
        %v337 = vsub.s32 %v333, %v336
        %vm338 = vcmp.lt.s32.totalorder %v337, 0
        %v339 = vsub.s32 0, %v337
        %v340 = vsel %vm338, %v339, %v337
        %v341 = vclz %v340
        %v342 = vsub.s32 %v341, 2
        %vm343 = vcmp.gt.s32.totalorder 0, %v342
        %v344 = vsel %vm343, 0, %v342
        %v345 = vsub.s32 32, %v344
        %v346 = vshll.u32 %v337, %v344
        %v347 = vshrl.u32 %v329, %v345
        %v348 = vor.u32 %v346, %v347
        %v349 = vsub.s32 4294967266, %v344
        %v350 = vadd.s32 %v349, 127
        %v351 = vshll.u32 %v350, 23
        %v352 = vor.u32 4788187, %v351
        %v353 = vand.u32 2147483647, %v352
        %v355 = vcvt.s32.f32 %v348
        %v356 = vmul.f32 %v355, %v353
        %v357 = vxor.u32 %v356, 2147483648
        %v358 = vsel %vm275, %v357, %v356
        %v359 = vsub.s32 4, %v335
        %v360 = vsel %vm275, %v359, %v335
        %v361 = vsel %vm274, %v269, %v358
        %v362 = vsel %vm274, 0, %v360
        %v363 = vcosq.f32.pop %v361
        %v364 = vsinq.f32.pop %v361
        %vm365 = vweird.f32 %v269
        %v366 = vadd.s32 %v362, 3
        %v367 = vand.u32 %v366, 3
        %vm368 = vcmp.lt.s32.totalorder %v367, 2
        %vm369 = vcmp.eq.s32.totalorder %v367, 0
        %v370 = vxor.u32 %v364, 2147483648
        %v371 = vsel %vm369, %v363, %v370
        %vm372 = vcmp.eq.s32.totalorder %v367, 2
        %v373 = vxor.u32 %v363, 2147483648
        %v374 = vsel %vm372, %v373, %v364
        %v375 = vsel %vm368, %v371, %v374
        %v376 = vsel %vm365, nan, %v375
        %v377 = vand.u32 2147483647, %v270
        %vm378 = vcmp.le.f32.partialorder %v377, 0.7853982
        %vm379 = vcmp.lt.s32.totalorder %v270, 0
        %v380 = vand.u32 %v270, 2139095040
        %v381 = vshrl.u32 %v380, 23
        %v382 = vsub.s32 %v381, 127
        %v383 = vand.u32 2147483647, %v270
        %v384 = vand.u32 %v383, 8388607
        %v385 = vor.u32 %v384, 8388608
        %v386 = vsub.s32 0, %v385
        %v387 = vadd.s32 %v382, 1
        %vm388 = vcmp.gt.s32.totalorder %v387, 0
        %v389 = vsel %vm388, %v387, 0
        %v390 = vshrl.u32 %v389, 5
        %v391 = vand.u32 %v389, 31
        %v392 = vsub.s32 32, %v391
        %v393 = vshrl.u32 683565275, %v392
        %v394 = vshll.u32 683565275, %v391
        %v395 = vshrl.u32 2475754826, %v392
        %v396 = vor.u32 %v394, %v395
        %v397 = vshll.u32 2475754826, %v391
        %v398 = vshrl.u32 2131351028, %v392
        %v399 = vor.u32 %v397, %v398
        %v400 = vshll.u32 2131351028, %v391
        %v401 = vshrl.u32 2102212464, %v392
        %v402 = vor.u32 %v400, %v401
        %v403 = vshll.u32 2102212464, %v391
        %v404 = vshrl.u32 920167782, %v392
        %v405 = vor.u32 %v403, %v404
        %v406 = vshll.u32 920167782, %v391
        %v407 = vshrl.u32 1326507024, %v392
        %v408 = vor.u32 %v406, %v407
        %vm409 = vcmp.lt.s32.totalorder %v390, 1
        %vm410 = vcmp.lt.s32.totalorder %v390, 2
        %vm411 = vcmp.lt.s32.totalorder %v390, 3
        %vm412 = vcmp.lt.s32.totalorder %v390, 4
        %v413 = vsel %vm409, %v393, %v396
        %v414 = vsel %vm412, %v402, 2102212464
        %v415 = vsel %vm411, %v399, %v414
        %v416 = vsel %vm410, %v413, %v415
        %v417 = vsel %vm409, %v396, %v399
        %v418 = vsel %vm412, %v405, 920167782
        %v419 = vsel %vm411, %v402, %v418
        %v420 = vsel %vm410, %v417, %v419
        %v421 = vsel %vm409, %v399, %v402
        %v422 = vsel %vm412, %v408, 1326507024
        %v423 = vsel %vm411, %v405, %v422
        %v424 = vsel %vm410, %v421, %v423
        %v425 = vshll.u32 %v385, 8
        %v426 = vmul.u32.u64.compose %v425, %v424
        %v427 = vextract.low.u32 %v426
        %v428 = vextract.high.u32 %v426
        %v429 = vmul.u32.u64.compose %v425, %v420
        %v430 = vextract.low.u32 %v429
        %v431 = vextract.high.u32 %v429
        %v432 = vmul.u32 %v425, %v416
        %v433 = vadd.s32 %v428, %v430
        %vm434 = vc.u32 %v428, %v430
        %v435 = vadd.s32 %v431, 1
        %v436 = vsel %vm434, %v435, %v431
        %v437 = vadd.s32 %v432, %v436
        %v438 = vadd.s32 %v437, 536870912
        %v439 = vshrl.u32 %v438, 30
        %v440 = vshll.u32 %v439, 30
        %v441 = vsub.s32 %v437, %v440
        %vm442 = vcmp.lt.s32.totalorder %v441, 0
        %v443 = vsub.s32 0, %v441
        %v444 = vsel %vm442, %v443, %v441
        %v445 = vclz %v444
        %v446 = vsub.s32 %v445, 2
        %vm447 = vcmp.gt.s32.totalorder 0, %v446
        %v448 = vsel %vm447, 0, %v446
        %v449 = vsub.s32 32, %v448
        %v450 = vshll.u32 %v441, %v448
        %v451 = vshrl.u32 %v433, %v449
        %v452 = vor.u32 %v450, %v451
        %v453 = vsub.s32 4294967266, %v448
        %v454 = vadd.s32 %v453, 127
        %v455 = vshll.u32 %v454, 23
        %v456 = vor.u32 4788187, %v455
        %v457 = vand.u32 2147483647, %v456
        %v459 = vcvt.s32.f32 %v452
        %v460 = vmul.f32 %v459, %v457
        %v461 = vxor.u32 %v460, 2147483648
        %v462 = vsel %vm379, %v461, %v460
        %v463 = vsub.s32 4, %v439
        %v464 = vsel %vm379, %v463, %v439
        %v465 = vsel %vm378, %v270, %v462
        %v466 = vsel %vm378, 0, %v464
        %v467 = vcosq.f32.pop %v465
        %v468 = vsinq.f32.pop %v465
        %vm469 = vweird.f32 %v270
        %v470 = vadd.s32 %v466, 3
        %v471 = vand.u32 %v470, 3
        %vm472 = vcmp.lt.s32.totalorder %v471, 2
        %vm473 = vcmp.eq.s32.totalorder %v471, 0
        %v474 = vxor.u32 %v468, 2147483648
        %v475 = vsel %vm473, %v467, %v474
        %vm476 = vcmp.eq.s32.totalorder %v471, 2
        %v477 = vxor.u32 %v467, 2147483648
        %v478 = vsel %vm476, %v477, %v468
        %v479 = vsel %vm472, %v475, %v478
        %v480 = vsel %vm469, nan, %v479
        %v481 = vand.u32 2147483647, %v271
        %vm482 = vcmp.le.f32.partialorder %v481, 0.7853982
        %vm483 = vcmp.lt.s32.totalorder %v271, 0
        %v484 = vand.u32 %v271, 2139095040
        %v485 = vshrl.u32 %v484, 23
        %v486 = vsub.s32 %v485, 127
        %v487 = vand.u32 2147483647, %v271
        %v488 = vand.u32 %v487, 8388607
        %v489 = vor.u32 %v488, 8388608
        %v490 = vsub.s32 0, %v489
        %v491 = vadd.s32 %v486, 1
        %vm492 = vcmp.gt.s32.totalorder %v491, 0
        %v493 = vsel %vm492, %v491, 0
        %v494 = vshrl.u32 %v493, 5
        %v495 = vand.u32 %v493, 31
        %v496 = vsub.s32 32, %v495
        %v497 = vshrl.u32 683565275, %v496
        %v498 = vshll.u32 683565275, %v495
        %v499 = vshrl.u32 2475754826, %v496
        %v500 = vor.u32 %v498, %v499
        %v501 = vshll.u32 2475754826, %v495
        %v502 = vshrl.u32 2131351028, %v496
        %v503 = vor.u32 %v501, %v502
        %v504 = vshll.u32 2131351028, %v495
        %v505 = vshrl.u32 2102212464, %v496
        %v506 = vor.u32 %v504, %v505
        %v507 = vshll.u32 2102212464, %v495
        %v508 = vshrl.u32 920167782, %v496
        %v509 = vor.u32 %v507, %v508
        %v510 = vshll.u32 920167782, %v495
        %v511 = vshrl.u32 1326507024, %v496
        %v512 = vor.u32 %v510, %v511
        %vm513 = vcmp.lt.s32.totalorder %v494, 1
        %vm514 = vcmp.lt.s32.totalorder %v494, 2
        %vm515 = vcmp.lt.s32.totalorder %v494, 3
        %vm516 = vcmp.lt.s32.totalorder %v494, 4
        %v517 = vsel %vm513, %v497, %v500
        %v518 = vsel %vm516, %v506, 2102212464
        %v519 = vsel %vm515, %v503, %v518
        %v520 = vsel %vm514, %v517, %v519
        %v521 = vsel %vm513, %v500, %v503
        %v522 = vsel %vm516, %v509, 920167782
        %v523 = vsel %vm515, %v506, %v522
        %v524 = vsel %vm514, %v521, %v523
        %v525 = vsel %vm513, %v503, %v506
        %v526 = vsel %vm516, %v512, 1326507024
        %v527 = vsel %vm515, %v509, %v526
        %v528 = vsel %vm514, %v525, %v527
        %v529 = vshll.u32 %v489, 8
        %v530 = vmul.u32.u64.compose %v529, %v528
        %v531 = vextract.low.u32 %v530
        %v532 = vextract.high.u32 %v530
        %v533 = vmul.u32.u64.compose %v529, %v524
        %v534 = vextract.low.u32 %v533
        %v535 = vextract.high.u32 %v533
        %v536 = vmul.u32 %v529, %v520
        %v537 = vadd.s32 %v532, %v534
        %vm538 = vc.u32 %v532, %v534
        %v539 = vadd.s32 %v535, 1
        %v540 = vsel %vm538, %v539, %v535
        %v541 = vadd.s32 %v536, %v540
        %v542 = vadd.s32 %v541, 536870912
        %v543 = vshrl.u32 %v542, 30
        %v544 = vshll.u32 %v543, 30
        %v545 = vsub.s32 %v541, %v544
        %vm546 = vcmp.lt.s32.totalorder %v545, 0
        %v547 = vsub.s32 0, %v545
        %v548 = vsel %vm546, %v547, %v545
        %v549 = vclz %v548
        %v550 = vsub.s32 %v549, 2
        %vm551 = vcmp.gt.s32.totalorder 0, %v550
        %v552 = vsel %vm551, 0, %v550
        %v553 = vsub.s32 32, %v552
        %v554 = vshll.u32 %v545, %v552
        %v555 = vshrl.u32 %v537, %v553
        %v556 = vor.u32 %v554, %v555
        %v557 = vsub.s32 4294967266, %v552
        %v558 = vadd.s32 %v557, 127
        %v559 = vshll.u32 %v558, 23
        %v560 = vor.u32 4788187, %v559
        %v561 = vand.u32 2147483647, %v560
        %v563 = vcvt.s32.f32 %v556
        %v564 = vmul.f32 %v563, %v561
        %v565 = vxor.u32 %v564, 2147483648
        %v566 = vsel %vm483, %v565, %v564
        %v567 = vsub.s32 4, %v543
        %v568 = vsel %vm483, %v567, %v543
        %v569 = vsel %vm482, %v271, %v566
        %v570 = vsel %vm482, 0, %v568
        %v571 = vcosq.f32.pop %v569
        %v572 = vsinq.f32.pop %v569
        %vm573 = vweird.f32 %v271
        %v574 = vadd.s32 %v570, 3
        %v575 = vand.u32 %v574, 3
        %vm576 = vcmp.lt.s32.totalorder %v575, 2
        %vm577 = vcmp.eq.s32.totalorder %v575, 0
        %v578 = vxor.u32 %v572, 2147483648
        %v579 = vsel %vm577, %v571, %v578
        %vm580 = vcmp.eq.s32.totalorder %v575, 2
        %v581 = vxor.u32 %v571, 2147483648
        %v582 = vsel %vm580, %v581, %v572
        %v583 = vsel %vm576, %v579, %v582
        %v584 = vsel %vm573, nan, %v583
        %v585 = vand.u32 2147483647, %v272
        %vm586 = vcmp.le.f32.partialorder %v585, 0.7853982
        %vm587 = vcmp.lt.s32.totalorder %v272, 0
        %v588 = vand.u32 %v272, 2139095040
        %v589 = vshrl.u32 %v588, 23
        %v590 = vsub.s32 %v589, 127
        %v591 = vand.u32 2147483647, %v272
        %v592 = vand.u32 %v591, 8388607
        %v593 = vor.u32 %v592, 8388608
        %v594 = vsub.s32 0, %v593
        %v595 = vadd.s32 %v590, 1
        %vm596 = vcmp.gt.s32.totalorder %v595, 0
        %v597 = vsel %vm596, %v595, 0
        %v598 = vshrl.u32 %v597, 5
        %v599 = vand.u32 %v597, 31
        %v600 = vsub.s32 32, %v599
        %v601 = vshrl.u32 683565275, %v600
        %v602 = vshll.u32 683565275, %v599
        %v603 = vshrl.u32 2475754826, %v600
        %v604 = vor.u32 %v602, %v603
        %v605 = vshll.u32 2475754826, %v599
        %v606 = vshrl.u32 2131351028, %v600
        %v607 = vor.u32 %v605, %v606
        %v608 = vshll.u32 2131351028, %v599
        %v609 = vshrl.u32 2102212464, %v600
        %v610 = vor.u32 %v608, %v609
        %v611 = vshll.u32 2102212464, %v599
        %v612 = vshrl.u32 920167782, %v600
        %v613 = vor.u32 %v611, %v612
        %v614 = vshll.u32 920167782, %v599
        %v615 = vshrl.u32 1326507024, %v600
        %v616 = vor.u32 %v614, %v615
        %vm617 = vcmp.lt.s32.totalorder %v598, 1
        %vm618 = vcmp.lt.s32.totalorder %v598, 2
        %vm619 = vcmp.lt.s32.totalorder %v598, 3
        %vm620 = vcmp.lt.s32.totalorder %v598, 4
        %v621 = vsel %vm617, %v601, %v604
        %v622 = vsel %vm620, %v610, 2102212464
        %v623 = vsel %vm619, %v607, %v622
        %v624 = vsel %vm618, %v621, %v623
        %v625 = vsel %vm617, %v604, %v607
        %v626 = vsel %vm620, %v613, 920167782
        %v627 = vsel %vm619, %v610, %v626
        %v628 = vsel %vm618, %v625, %v627
        %v629 = vsel %vm617, %v607, %v610
        %v630 = vsel %vm620, %v616, 1326507024
        %v631 = vsel %vm619, %v613, %v630
        %v632 = vsel %vm618, %v629, %v631
        %v633 = vshll.u32 %v593, 8
        %v634 = vmul.u32.u64.compose %v633, %v632
        %v635 = vextract.low.u32 %v634
        %v636 = vextract.high.u32 %v634
        %v637 = vmul.u32.u64.compose %v633, %v628
        %v638 = vextract.low.u32 %v637
        %v639 = vextract.high.u32 %v637
        %v640 = vmul.u32 %v633, %v624
        %v641 = vadd.s32 %v636, %v638
        %vm642 = vc.u32 %v636, %v638
        %v643 = vadd.s32 %v639, 1
        %v644 = vsel %vm642, %v643, %v639
        %v645 = vadd.s32 %v640, %v644
        %v646 = vadd.s32 %v645, 536870912
        %v647 = vshrl.u32 %v646, 30
        %v648 = vshll.u32 %v647, 30
        %v649 = vsub.s32 %v645, %v648
        %vm650 = vcmp.lt.s32.totalorder %v649, 0
        %v651 = vsub.s32 0, %v649
        %v652 = vsel %vm650, %v651, %v649
        %v653 = vclz %v652
        %v654 = vsub.s32 %v653, 2
        %vm655 = vcmp.gt.s32.totalorder 0, %v654
        %v656 = vsel %vm655, 0, %v654
        %v657 = vsub.s32 32, %v656
        %v658 = vshll.u32 %v649, %v656
        %v659 = vshrl.u32 %v641, %v657
        %v660 = vor.u32 %v658, %v659
        %v661 = vsub.s32 4294967266, %v656
        %v662 = vadd.s32 %v661, 127
        %v663 = vshll.u32 %v662, 23
        %v664 = vor.u32 4788187, %v663
        %v665 = vand.u32 2147483647, %v664
        %v667 = vcvt.s32.f32 %v660
        %v668 = vmul.f32 %v667, %v665
        %v669 = vxor.u32 %v668, 2147483648
        %v670 = vsel %vm587, %v669, %v668
        %v671 = vsub.s32 4, %v647
        %v672 = vsel %vm587, %v671, %v647
        %v673 = vsel %vm586, %v272, %v670
        %v674 = vsel %vm586, 0, %v672
        %v675 = vcosq.f32.pop %v673
        %v676 = vsinq.f32.pop %v673
        %vm677 = vweird.f32 %v272
        %v678 = vadd.s32 %v674, 3
        %v679 = vand.u32 %v678, 3
        %vm680 = vcmp.lt.s32.totalorder %v679, 2
        %vm681 = vcmp.eq.s32.totalorder %v679, 0
        %v682 = vxor.u32 %v676, 2147483648
        %v683 = vsel %vm681, %v675, %v682
        %vm684 = vcmp.eq.s32.totalorder %v679, 2
        %v685 = vxor.u32 %v675, 2147483648
        %v686 = vsel %vm684, %v685, %v676
        %v687 = vsel %vm680, %v683, %v686
        %v688 = vsel %vm677, nan, %v687
        %689 = vst [vmem:[%s149] sm:$0xff] %v376
        %vm690 = vcmask 523264
        %691 = vst.msk [vmem:[%s149 + $0x8] sm:$0xff] %vm690, %v480
        %692 = vst [vmem:[%s149 + $0x10] sm:$0xff] %v584
        %693 = vst.msk [vmem:[%s149 + $0x18] sm:$0xff] %vm690, %v688
        %s694 = sand.u32 %s71, 1
        %s695 = scalar_lea.sflag [#allocation3], %s694
        %s696 = sand.u32 %s71, 1
        %s697 = smul.addr %s696, 32
        %s698 = scalar_lea.vmem [#allocation2], %s697
        // Predicated region
        $region29: #{tpu_custom_call.1} parent=27 // pred_check
          %p699 = pneg %p81
        $region30: #{tpu_custom_call.1} parent=27 // pred_check_branch
          %701 = sbr.rel (%p699) target = $region32
        $region31: #{tpu_custom_call.1} parent=27 // pred_region
          %s702 = smul.u32 2, %s16
          %s703 = ssub.s32 5, %s702
          %p704 = scmp.lt.s32.totalorder %s703, 2
          %s705 = scalar_select %p704, %s703, 2
          %s706 = smul.u32 128, %s705
          %s707 = smul.u32 %s706, 2
          %s709 = ssub.s32 512, %s707
          %710 = vsyncadd %s695, %s709
          %p711 = scmp.ne.s32.totalorder 0, %s707
          %s712 = smul.addr %s702, 2
          %s713 = smul.addr %s712, 128
          %s714 = scalar_lea.hbm %s2, %s713
          %s715 = smul.u32 16, %s705
          %s716 = sshll.u32 %s698, 4
          %s717 = int_to_ptr.vmem [resolvable:$true] %s716
          %s718 = sshll.u32 %s715, 4
          %722 = dma.vmem_to_hbm [thread:$0]  (%p711), %s717, %s718, %s714, %s695, 256, 256, 16
        $region32: #{tpu_custom_call.1} parent=27 // pred_fallthru
          _
      $region28: #{tpu_custom_call.1} parent=5 // pred_fallthru
        _
      %p723 = scmp.le.s32.totalorder 2, %s11
      // Predicated region
      $region33: #{tpu_custom_call.1} parent=5 // pred_check
        %p724 = pneg %p723
      $region34: #{tpu_custom_call.1} parent=5 // pred_check_branch
        %726 = sbr.rel (%p724) target = $region36
      $region35: #{tpu_custom_call.1} parent=5 // pred_region
        %s727 = ssub.s32 %s11, 2
        // Predicated region
        $region37: #{tpu_custom_call.1} parent=35 // pred_check
          %p728 = pneg %p87
        $region38: #{tpu_custom_call.1} parent=35 // pred_check_branch
          %730 = sbr.rel (%p728) target = $region40
        $region39: #{tpu_custom_call.1} parent=35 // pred_region
          %s731 = sand.u32 %s72, 1
          %s732 = scalar_lea.sflag [#allocation3], %s731
          %s733 = sand.u32 %s72, 1
          %s734 = smul.addr %s733, 32
          %s735 = scalar_lea.vmem [#allocation2], %s734
          %736 = dma.done %s732, 512
        $region40: #{tpu_custom_call.1} parent=35 // pred_fallthru
          _
      $region36: #{tpu_custom_call.1} parent=5 // pred_fallthru
        _
    $region6: #{tpu_custom_call.1} parent=1 // loop_footer
      %s15 = sadd.s32 1, %s11
    $region7: #{tpu_custom_call.1} parent=1 // loop_footer_branch
      %10 = sbr.rel target = $region3
    $region8: #{tpu_custom_call.1} parent=1 // loop_exit
      _
    %737 = vsyncpa [#allocation3], 1
    %s738 = scalar_lea.sflag [#allocation3], 1
    %739 = vsyncpa %s738, 1

</llo_original>
